<compile_context>
chip_gen: v7x
topology: tpu7x:2x2x1
jax: 0.10.0
libtpu: 0.0.40
codegen_flags: <defaults>
</compile_context>

<pallas_src>
import numpy as np
import jax
import jax.numpy as jnp
from jax import lax
from jax.experimental import pallas as pl
from jax.experimental.pallas import tpu as pltpu


def _round_up(x, m):
    return ((x + m - 1) // m) * m


# ----------------------------------------------------------------------------
# Kernel 1: masked mean pooling (readout == 'mean' / 'ch')
#   out[b, h] = sum_s(emb[b,s,h] * mask[b,s]) / clamp(sum_s(mask[b,s]), 1e-9)
# ----------------------------------------------------------------------------
def _mask_pool_kernel(emb_ref, mask_ref, out_ref, acc_ref, den_ref):
    s = pl.program_id(1)

    @pl.when(s == 0)
    def _():
        acc_ref[...] = jnp.zeros_like(acc_ref)
        den_ref[...] = jnp.zeros_like(den_ref)

    emb = emb_ref[...].astype(jnp.float32)                  # [TB, TS, H]  (f32 MAC)
    m = mask_ref[...].astype(jnp.float32)                   # [TB, TS]
    acc_ref[...] += jnp.sum(emb * m[:, :, None], axis=1)    # [TB, H]
    den_ref[...] += jnp.sum(m, axis=1, keepdims=True)       # [TB, 1]

    @pl.when(s == pl.num_programs(1) - 1)
    def _():
        den = jnp.maximum(den_ref[...], 1e-9)               # torch.clamp(min=1e-9)
        out_ref[...] = acc_ref[...] * pl.reciprocal(den)    # exact; numerics match ref


def mask_pooling_pallas(token_embeddings, attention_mask, *, tb=8, ts=512):
    """Masked mean pooling. emb [B,S,H] (bf16 preferred), mask [B,S] (int/bool).

    Returns f32 [B, H]."""
    B, S, H = token_embeddings.shape
    # Tiles must divide the array; fall back to full extent for small/odd dims.
    TB = B if (B <= tb or B % tb != 0) else tb       # tb=8  -> sublane aligned
    TS = S if (S <= ts or S % ts != 0) else ts       # ts=512 -> lane aligned

    return pl.pallas_call(
        _mask_pool_kernel,
        out_shape=jax.ShapeDtypeStruct((B, H), jnp.float32),
        grid_spec=pltpu.PrefetchScalarGridSpec(
            num_scalar_prefetch=0,
            grid=(B // TB, S // TS),                 # S last = reduction axis
            in_specs=[
                pl.BlockSpec((TB, TS, H), lambda b, s: (b, s, 0)),
                pl.BlockSpec((TB, TS), lambda b, s: (b, s)),
            ],
            out_specs=pl.BlockSpec((TB, H), lambda b, s: (b, 0)),
            scratch_shapes=[
                pltpu.VMEM((TB, H), jnp.float32),    # numerator accumulator
                pltpu.VMEM((TB, 1), jnp.float32),    # mask-count accumulator
            ],
        ),
        compiler_params=pltpu.CompilerParams(
            dimension_semantics=("parallel", "arbitrary")),
    )(token_embeddings, attention_mask)


# ----------------------------------------------------------------------------
# Kernel 2: fused similarity matmul  S = input_reps @ class_reps.T
# ----------------------------------------------------------------------------
def _similarity_kernel(a_ref, c_ref, o_ref):
    # [TM, H] x [TN, H], contracting H with H  ->  [TM, TN] on the MXU, f32 acc.
    o_ref[...] = lax.dot_general(
        a_ref[...], c_ref[...],
        dimension_numbers=(((1,), (1,)), ((), ())),
        preferred_element_type=jnp.float32)


def similarity_pallas(input_reps, class_reps, *, tm=256, tn=256):
    """One lane-dense matmul covering every head at once."""
    M, H = input_reps.shape
    N, H2 = class_reps.shape
    assert H == H2

    def pad_tile(dim, pref, align):
        if dim <= pref:
            p = _round_up(dim, align)
            return p, p
        return _round_up(dim, pref), pref

    Mp, TM = pad_tile(M, tm, 8)        # rows: sublane aligned
    Np, TN = pad_tile(N, tn, 128)      # cols: lane-dense output (no vst.msk)
    a = jnp.pad(input_reps, ((0, Mp - M), (0, 0)))
    c = jnp.pad(class_reps, ((0, Np - N), (0, 0)))

    sims = pl.pallas_call(
        _similarity_kernel,
        out_shape=jax.ShapeDtypeStruct((Mp, Np), jnp.float32),
        grid_spec=pltpu.PrefetchScalarGridSpec(
            num_scalar_prefetch=0,
            grid=(Mp // TM, Np // TN),
            in_specs=[
                pl.BlockSpec((TM, H), lambda i, j: (i, 0)),
                pl.BlockSpec((TN, H), lambda i, j: (j, 0)),
            ],
            out_specs=pl.BlockSpec((TM, TN), lambda i, j: (i, j)),
        ),
        compiler_params=pltpu.CompilerParams(
            dimension_semantics=("parallel", "parallel")),
    )(a, c)
    return sims[:M, :N]


# ----------------------------------------------------------------------------
# MultiHeadContrastiveLanguageModel (forward only)
# ----------------------------------------------------------------------------
class MultiHeadContrastiveLanguageModel:
    def __init__(self, vocab_size, hidden_size, key, readout="mean"):
        self.hidden_size = hidden_size
        self.readout_fn = readout
        # bf16 embedding table: deterministic stand-in for the LM hidden states.
        self.embedding = (
            jax.random.normal(key, (vocab_size, hidden_size), jnp.float32) * 0.02
        ).astype(jnp.bfloat16)

    def readout(self, model_inputs, token_embeddings, readout_masks=None):
        if self.readout_fn == "cls":
            return token_embeddings[:, 0].astype(jnp.float32)
        elif self.readout_fn == "mean":
            return mask_pooling_pallas(token_embeddings,
                                       model_inputs["attention_mask"])
        elif self.readout_fn == "ch" and readout_masks is not None:
            return mask_pooling_pallas(token_embeddings, readout_masks)
        else:
            return token_embeddings[:, 0].astype(jnp.float32)

    def _lm_forward(self, tokens):
        readout_mask = tokens.get("readout_mask", None)
        # TODO(synk): pretrained transformer body not replicated; embedding
        # lookup produces the "last_hidden_state" consumed by the readout.
        token_embeddings = self.embedding[tokens["input_ids"]]   # [B, S, H] bf16
        return self.readout(tokens, token_embeddings, readout_mask)

    def forward(self, input_tokens, input_head_indices, class_tokens,
                class_head_indices):
        input_reps = self._lm_forward(input_tokens)    # [B_in,  H] f32
        class_reps = self._lm_forward(class_tokens)    # [B_cls, H] f32

        # Single fused lane-dense similarity matrix; per-head outputs are
        # static slices of it (no host round-trip of activations).
        sims = similarity_pallas(input_reps, class_reps)   # [B_in, B_cls]

        in_idx = np.asarray(input_head_indices)
        cls_idx = np.asarray(class_head_indices)
        final_preds = {}
        for i in np.unique(cls_idx):                    # == torch.unique(...)
            if np.any(in_idx == i):
                rows = np.nonzero(in_idx == i)[0]
                cols = np.nonzero(cls_idx == i)[0]
                final_preds[int(i)] = jnp.take(
                    jnp.take(sims, rows, axis=0), cols, axis=1)
            else:
                final_preds[int(i)] = jnp.zeros((0,), jnp.float32)  # torch.tensor([])
        return final_preds


# ----------------------------------------------------------------------------
# Pure-numpy (f64) reference for correctness checking
# ----------------------------------------------------------------------------
def _reference(model, input_tokens, class_tokens, in_idx, cls_idx):
    emb = np.asarray(model.embedding.astype(jnp.float32)).astype(np.float64)

    def pool(tok):
        e = emb[np.asarray(tok["input_ids"])]
        m = np.asarray(tok["attention_mask"]).astype(np.float64)[:, :, None]
        return (e * m).sum(axis=1) / np.maximum(m.sum(axis=1), 1e-9)

    ri, rc = pool(input_tokens), pool(class_tokens)
    in_idx = np.asarray(in_idx)
    cls_idx = np.asarray(cls_idx)
    out = {}
    for i in np.unique(cls_idx):
        if np.any(in_idx == i):
            out[int(i)] = ri[in_idx == i] @ rc[cls_idx == i].T
        else:
            out[int(i)] = np.zeros((0,), np.float64)
    return out


if __name__ == "__main__":
    key = jax.random.PRNGKey(0)
    V, H, S = 64, 32, 16
    B_in, B_cls = 8, 6

    k_emb, k1, k2, k3, k4 = jax.random.split(key, 5)
    model = MultiHeadContrastiveLanguageModel(V, H, k_emb, readout="mean")

    input_ids = jax.random.randint(k1, (B_in, S), 0, V)
    input_mask = (jax.random.uniform(k2, (B_in, S)) > 0.3).astype(jnp.int32)
    input_mask = input_mask.at[:, 0].set(1)            # >=1 valid token per row
    class_ids = jax.random.randint(k3, (B_cls, S), 0, V)
    class_mask = (jax.random.uniform(k4, (B_cls, S)) > 0.3).astype(jnp.int32)
    class_mask = class_mask.at[:, 0].set(1)

    input_tokens = {"input_ids": input_ids, "attention_mask": input_mask}
    class_tokens = {"input_ids": class_ids, "attention_mask": class_mask}
    input_head_indices = np.array([0, 1, 2, 0, 1, 2, 0, 1], dtype=np.int32)
    # head 3 has class rows but no input rows -> exercises the empty branch
    class_head_indices = np.array([0, 0, 1, 1, 2, 3], dtype=np.int32)

    preds = model.forward(input_tokens, input_head_indices,
                          class_tokens, class_head_indices)
    preds = {k: jax.block_until_ready(v) for k, v in preds.items()}

    ref = _reference(model, input_tokens, class_tokens,
                     input_head_indices, class_head_indices)
    assert set(preds.keys()) == set(ref.keys())
    for k in sorted(preds):
        np.testing.assert_allclose(np.asarray(preds[k]), np.asarray(ref[k]),
                                   rtol=1e-4, atol=1e-6)

    print("KERNEL_OK")
</pallas_src>

<mosaic_0001>
module attributes {stable_mosaic.version = 11 : i64} {
  func.func @_mask_pool_kernel(%arg0: i32, %arg1: i32, %arg2: memref<8x16x32xbf16, #tpu.memory_space<vmem>>, %arg3: memref<8x16xi32, #tpu.memory_space<vmem>>, %arg4: memref<8x32xf32, #tpu.memory_space<vmem>>, %arg5: memref<8x32xf32, #tpu.memory_space<vmem>>, %arg6: memref<8x1xf32, #tpu.memory_space<vmem>>) attributes {dimension_semantics = [#tpu.dimension_semantics<parallel>, #tpu.dimension_semantics<arbitrary>], iteration_bounds = array<i64: 1, 1>, scalar_prefetch = 0 : i64, scratch_operands = 2 : i64, tpu.core_type = #tpu.core_type<tc>, window_params = [{transform_indices = @transform_0, window_bounds = array<i64: 8, 16, 32>}, {transform_indices = @transform_1, window_bounds = array<i64: 8, 16>}, {transform_indices = @transform_2, window_bounds = array<i64: 8, 32>}]} {
    %c0_i32 = arith.constant 0 : i32
    %0 = arith.cmpi eq, %arg1, %c0_i32 : i32
    %1 = arith.extui %0 : i1 to i32
    %c0_i32_0 = arith.constant 0 : i32
    %2 = arith.cmpi ne, %1, %c0_i32_0 : i32
    scf.if %2 {
      %cst_16 = arith.constant 0.000000e+00 : f32
      %22 = vector.broadcast %cst_16 : f32 to vector<8x32xf32>
      %c0_17 = arith.constant 0 : index
      %c0_18 = arith.constant 0 : index
      %23 = vector.load %arg5[%c0_17, %c0_18] : memref<8x32xf32, #tpu.memory_space<vmem>>, vector<8x32xf32>
      tpu.vector_store %arg5[%c0_17, %c0_18], %22 {strides = array<i32>} : memref<8x32xf32, #tpu.memory_space<vmem>>, vector<8x32xf32>,
      %cst_19 = arith.constant 0.000000e+00 : f32
      %24 = vector.broadcast %cst_19 : f32 to vector<8x1xf32>
      %c0_20 = arith.constant 0 : index
      %c0_21 = arith.constant 0 : index
      %25 = vector.load %arg6[%c0_20, %c0_21] : memref<8x1xf32, #tpu.memory_space<vmem>>, vector<8x1xf32>
      tpu.vector_store %arg6[%c0_20, %c0_21], %24 {strides = array<i32>} : memref<8x1xf32, #tpu.memory_space<vmem>>, vector<8x1xf32>,
    } else {
    }
    %c0 = arith.constant 0 : index
    %c0_1 = arith.constant 0 : index
    %c0_2 = arith.constant 0 : index
    %3 = vector.load %arg2[%c0, %c0_1, %c0_2] : memref<8x16x32xbf16, #tpu.memory_space<vmem>>, vector<8x16x32xbf16>
    %4 = arith.extf %3 : vector<8x16x32xbf16> to vector<8x16x32xf32>
    %c0_3 = arith.constant 0 : index
    %c0_4 = arith.constant 0 : index
    %5 = vector.load %arg3[%c0_3, %c0_4] : memref<8x16xi32, #tpu.memory_space<vmem>>, vector<8x16xi32>
    %6 = arith.sitofp %5 : vector<8x16xi32> to vector<8x16xf32>
    %c0_5 = arith.constant 0 : index
    %c0_6 = arith.constant 0 : index
    %7 = vector.load %arg5[%c0_5, %c0_6] : memref<8x32xf32, #tpu.memory_space<vmem>>, vector<8x32xf32>
    %8 = vector.shape_cast %6 : vector<8x16xf32> to vector<8x16x1xf32>
    %9 = vector.broadcast %8 : vector<8x16x1xf32> to vector<8x16x32xf32>
    %10 = arith.mulf %4, %9 : vector<8x16x32xf32>
    %cst = arith.constant dense<0.000000e+00> : vector<8x32xf32>
    %11 = vector.multi_reduction <add>, %10, %cst [1] : vector<8x16x32xf32> to vector<8x32xf32>
    %12 = arith.addf %7, %11 : vector<8x32xf32>
    %c0_7 = arith.constant 0 : index
    %c0_8 = arith.constant 0 : index
    %13 = vector.load %arg5[%c0_7, %c0_8] : memref<8x32xf32, #tpu.memory_space<vmem>>, vector<8x32xf32>
    tpu.vector_store %arg5[%c0_7, %c0_8], %12 {strides = array<i32>} : memref<8x32xf32, #tpu.memory_space<vmem>>, vector<8x32xf32>,
    %c0_9 = arith.constant 0 : index
    %c0_10 = arith.constant 0 : index
    %14 = vector.load %arg6[%c0_9, %c0_10] : memref<8x1xf32, #tpu.memory_space<vmem>>, vector<8x1xf32>
    %cst_11 = arith.constant dense<0.000000e+00> : vector<8xf32>
    %15 = vector.multi_reduction <add>, %6, %cst_11 [1] : vector<8x16xf32> to vector<8xf32>
    %16 = vector.shape_cast %15 : vector<8xf32> to vector<8x1xf32>
    %17 = arith.addf %14, %16 : vector<8x1xf32>
    %c0_12 = arith.constant 0 : index
    %c0_13 = arith.constant 0 : index
    %18 = vector.load %arg6[%c0_12, %c0_13] : memref<8x1xf32, #tpu.memory_space<vmem>>, vector<8x1xf32>
    tpu.vector_store %arg6[%c0_12, %c0_13], %17 {strides = array<i32>} : memref<8x1xf32, #tpu.memory_space<vmem>>, vector<8x1xf32>,
    %c0_i32_14 = arith.constant 0 : i32
    %19 = arith.cmpi eq, %arg1, %c0_i32_14 : i32
    %20 = arith.extui %19 : i1 to i32
    %c0_i32_15 = arith.constant 0 : i32
    %21 = arith.cmpi ne, %20, %c0_i32_15 : i32
    scf.if %21 {
      %c0_16 = arith.constant 0 : index
      %c0_17 = arith.constant 0 : index
      %22 = vector.load %arg6[%c0_16, %c0_17] : memref<8x1xf32, #tpu.memory_space<vmem>>, vector<8x1xf32>
      %cst_18 = arith.constant 9.99999971E-10 : f32
      %23 = vector.broadcast %cst_18 : f32 to vector<8x1xf32>
      %24 = arith.maximumf %22, %23 : vector<8x1xf32>
      %c0_19 = arith.constant 0 : index
      %c0_20 = arith.constant 0 : index
      %25 = vector.load %arg5[%c0_19, %c0_20] : memref<8x32xf32, #tpu.memory_space<vmem>>, vector<8x32xf32>
      %26 = tpu.reciprocal %24 : vector<8x1xf32> -> vector<8x1xf32>
      %27 = vector.broadcast %26 : vector<8x1xf32> to vector<8x32xf32>
      %28 = arith.mulf %25, %27 : vector<8x32xf32>
      %c0_21 = arith.constant 0 : index
      %c0_22 = arith.constant 0 : index
      %29 = vector.load %arg4[%c0_21, %c0_22] : memref<8x32xf32, #tpu.memory_space<vmem>>, vector<8x32xf32>
      tpu.vector_store %arg4[%c0_21, %c0_22], %28 {strides = array<i32>} : memref<8x32xf32, #tpu.memory_space<vmem>>, vector<8x32xf32>,
    } else {
    }
    return
  }
  func.func @transform_0(%arg0: i32, %arg1: i32) -> (i32, i32, i32) {
    %c0_i32 = arith.constant 0 : i32
    %c0_i32_0 = arith.constant 0 : i32
    return %arg0, %arg1, %c0_i32 : i32, i32, i32
  }
  func.func @transform_1(%arg0: i32, %arg1: i32) -> (i32, i32) {
    %c0_i32 = arith.constant 0 : i32
    return %arg0, %arg1 : i32, i32
  }
  func.func @transform_2(%arg0: i32, %arg1: i32) -> (i32, i32) {
    %c0_i32 = arith.constant 0 : i32
    %c0_i32_0 = arith.constant 0 : i32
    return %arg0, %c0_i32 : i32, i32
  }
}

</mosaic_0001>

<llo_original>
// kernel: tpu_custom_call.1
$region0: #{tpu_custom_call.1}
  #allocation0 [shape = 'u32[]', space=smem, size = 0x4, offset = 0x4, fixed_abs, tag = 'smem constant byte address 0x4 - core index']
  #allocation1 [shape = 'u32[144,128]{1,0:T(1,128)}', space=vmem, size = 0x12000, scoped, tag = 'internal scratch']
  #allocation2 [shape = 'f32[8,32]{1,0:T(8,128)}', space=vmem, size = 0x1000, scoped, tag = 'scratch operand']
  #allocation3 [shape = 'f32[8,1]{1,0:T(8,128)}', space=vmem, size = 0x1000, scoped, tag = 'scratch operand']
  %s0 = inlined_call_operand.hbm [shape: bf16[8,16,32], index: 0, kind: input, shape index: {}]
  %s1 = inlined_call_operand.hbm [shape: s32[8,16], index: 1, kind: input, shape index: {}]
  %s2 = inlined_call_operand.hbm [shape: f32[8,32], index: 2, kind: output, shape index: {}]
  %s3 = sld [smem:[#allocation0]]
  $region34: #{tpu_custom_call.1} parent=0
    _
  %s5 = ssub.s32 1, %s3
  %s6 = scalar_select 0, %s5, %s3
  $region1: #{tpu_custom_call.1} parent=0
    #allocation4 [shape = 'u8[32768]{0}', space=vmem, size = 0x8000, scoped, tag = 'input window, operand 0, single buffered']
    #allocation5 [shape = 's32[1]{0}', space=sflag, size = 0x4, scoped, tag = 'scoped memory for tpu_custom_call.1']
    #allocation6 [shape = 's32[1]{0}', space=sflag, size = 0x4, scoped, tag = 'scoped memory for tpu_custom_call.1']
    #allocation7 [shape = 'u8[4096]{0}', space=vmem, size = 0x1000, scoped, tag = 'input window, operand 1, single buffered']
    #allocation8 [shape = 's32[1]{0}', space=sflag, size = 0x4, scoped, tag = 'scoped memory for tpu_custom_call.1']
    #allocation9 [shape = 'u8[4096]{0}', space=vmem, size = 0x1000, scoped, tag = 'output window, operand 0, single buffered']
    %7 = vsyncpa [#allocation5], 0
    %8 = vsyncpa [#allocation8], 0
    %9 = vsyncpa [#allocation6], 0
    // Predicated region
    $region2: #{tpu_custom_call.1} parent=1 // pred_check
      _
    $region3: #{tpu_custom_call.1} parent=1 // pred_check_branch
      %11 = sbr.rel (0) target = $region5
    $region4: #{tpu_custom_call.1} parent=1 // pred_region
      %s13 = ssub.s32 1024, 1024
      %14 = vsyncadd [#allocation5], %s13
      %s15 = sshll.u32 [#allocation4], 4
      %s16 = int_to_ptr.vmem [resolvable:$true] %s15
      %21 = dma.hbm_to_vmem [thread:$0]  %s0, 1024, %s16, [#allocation5], 64, 64, 4
    $region5: #{tpu_custom_call.1} parent=1 // pred_fallthru
      _
    // Predicated region
    $region6: #{tpu_custom_call.1} parent=1 // pred_check
      _
    $region7: #{tpu_custom_call.1} parent=1 // pred_check_branch
      %23 = sbr.rel (0) target = $region9
    $region8: #{tpu_custom_call.1} parent=1 // pred_region
      %s25 = ssub.s32 128, 128
      %26 = vsyncadd [#allocation8], %s25
      %s28 = sshll.u32 [#allocation7], 4
      %s29 = int_to_ptr.vmem [resolvable:$true] %s28
      %31 = dma.hbm_to_vmem [thread:$0]  %s1, 128, %s29, [#allocation8]
    $region9: #{tpu_custom_call.1} parent=1 // pred_fallthru
      _
    // Predicated region
    $region10: #{tpu_custom_call.1} parent=1 // pred_check
      _
    $region11: #{tpu_custom_call.1} parent=1 // pred_check_branch
      %33 = sbr.rel (0) target = $region13
    $region12: #{tpu_custom_call.1} parent=1 // pred_region
      %34 = dma.done [#allocation5], 1024
    $region13: #{tpu_custom_call.1} parent=1 // pred_fallthru
      _
    // Predicated region
    $region14: #{tpu_custom_call.1} parent=1 // pred_check
      _
    $region15: #{tpu_custom_call.1} parent=1 // pred_check_branch
      %36 = sbr.rel (0) target = $region17
    $region16: #{tpu_custom_call.1} parent=1 // pred_region
      %37 = dma.done [#allocation8], 128
    $region17: #{tpu_custom_call.1} parent=1 // pred_fallthru
      _
    %p38 = scmp.eq.s32.totalorder 0, 0
    // Predicated region
    $region18: #{tpu_custom_call.1} parent=1 // pred_check
      %p39 = pneg %p38
    $region19: #{tpu_custom_call.1} parent=1 // pred_check_branch
      %41 = sbr.rel (%p39) target = $region21
    $region20: #{tpu_custom_call.1} parent=1 // pred_region
      %vm42 = vcmask 261120
      %43 = vst.msk [vmem:[#allocation2] sm:$0xff] %vm42, 0.0
      %vm44 = vcmask 7168
      %45 = vst.msk [vmem:[#allocation3] sm:$0xff] %vm44, 0.0
    $region21: #{tpu_custom_call.1} parent=1 // pred_fallthru
      _
    %v46 = vld [vmem:[#allocation4] sm:$0xf]
    %v47 = vld [vmem:[#allocation4 + $0x4] sm:$0xf]
    %v48 = vld [vmem:[#allocation4 + $0x8] sm:$0xf]
    %v49 = vld [vmem:[#allocation4 + $0xc] sm:$0xf]
    %v50 = vld [vmem:[#allocation4 + $0x10] sm:$0xf]
    %v51 = vld [vmem:[#allocation4 + $0x14] sm:$0xf]
    %v52 = vld [vmem:[#allocation4 + $0x18] sm:$0xf]
    %v53 = vld [vmem:[#allocation4 + $0x1c] sm:$0xf]
    %v54 = vld [vmem:[#allocation4 + $0x20] sm:$0xf]
    %v55 = vld [vmem:[#allocation4 + $0x24] sm:$0xf]
    %v56 = vld [vmem:[#allocation4 + $0x28] sm:$0xf]
    %v57 = vld [vmem:[#allocation4 + $0x2c] sm:$0xf]
    %v58 = vld [vmem:[#allocation4 + $0x30] sm:$0xf]
    %v59 = vld [vmem:[#allocation4 + $0x34] sm:$0xf]
    %v60 = vld [vmem:[#allocation4 + $0x38] sm:$0xf]
    %v61 = vld [vmem:[#allocation4 + $0x3c] sm:$0xf]
    %v62 = vunpack.c.l.bf16 %v46
    %v63 = vunpack.c.l.bf16 %v47
    %v64 = vunpack.c.l.bf16 %v48
    %v65 = vunpack.c.l.bf16 %v49
    %v66 = vunpack.c.l.bf16 %v50
    %v67 = vunpack.c.l.bf16 %v51
    %v68 = vunpack.c.l.bf16 %v52
    %v69 = vunpack.c.l.bf16 %v53
    %v70 = vunpack.c.l.bf16 %v54
    %v71 = vunpack.c.l.bf16 %v55
    %v72 = vunpack.c.l.bf16 %v56
    %v73 = vunpack.c.l.bf16 %v57
    %v74 = vunpack.c.l.bf16 %v58
    %v75 = vunpack.c.l.bf16 %v59
    %v76 = vunpack.c.l.bf16 %v60
    %v77 = vunpack.c.l.bf16 %v61
    %v78 = vld [vmem:[#allocation7] sm:$0xff]
    %v79 = vcvt.s32.f32 %v78
    %v80 = vld [vmem:[#allocation2] sm:$0xff]
    %v81 = vlaneseq
    %v82 = vshrl.u32 %v81, 7
    %v83 = vsub.s32 0, %v82
    %v84 = vrot.slane %v79, %v83
    %86 = vbcast.lane.b32.xlu0 %v84, 256
    %v87 = vpop.permute.xlu0 %86
    %s89 = sor.u32 256, 8
    %90 = vbcast.lane.b32.xlu0 %v84, %s89
    %v91 = vpop.permute.xlu0 %90
    %v92 = vlaneseq
    %v93 = vshrl.u32 %v92, 7
    %v94 = vsub.s32 1, %v93
    %v95 = vrot.slane %v79, %v94
    %97 = vbcast.lane.b32.xlu0 %v95, 256
    %v98 = vpop.permute.xlu0 %97
    %s100 = sor.u32 256, 8
    %101 = vbcast.lane.b32.xlu0 %v95, %s100
    %v102 = vpop.permute.xlu0 %101
    %v103 = vlaneseq
    %v104 = vshrl.u32 %v103, 7
    %v105 = vsub.s32 2, %v104
    %v106 = vrot.slane %v79, %v105
    %108 = vbcast.lane.b32.xlu0 %v106, 256
    %v109 = vpop.permute.xlu0 %108
    %s111 = sor.u32 256, 8
    %112 = vbcast.lane.b32.xlu0 %v106, %s111
    %v113 = vpop.permute.xlu0 %112
    %v114 = vlaneseq
    %v115 = vshrl.u32 %v114, 7
    %v116 = vsub.s32 3, %v115
    %v117 = vrot.slane %v79, %v116
    %119 = vbcast.lane.b32.xlu0 %v117, 256
    %v120 = vpop.permute.xlu0 %119
    %s122 = sor.u32 256, 8
    %123 = vbcast.lane.b32.xlu0 %v117, %s122
    %v124 = vpop.permute.xlu0 %123
    %v125 = vlaneseq
    %v126 = vshrl.u32 %v125, 7
    %v127 = vsub.s32 4, %v126
    %v128 = vrot.slane %v79, %v127
    %130 = vbcast.lane.b32.xlu0 %v128, 256
    %v131 = vpop.permute.xlu0 %130
    %s133 = sor.u32 256, 8
    %134 = vbcast.lane.b32.xlu0 %v128, %s133
    %v135 = vpop.permute.xlu0 %134
    %v136 = vlaneseq
    %v137 = vshrl.u32 %v136, 7
    %v138 = vsub.s32 5, %v137
    %v139 = vrot.slane %v79, %v138
    %141 = vbcast.lane.b32.xlu0 %v139, 256
    %v142 = vpop.permute.xlu0 %141
    %s144 = sor.u32 256, 8
    %145 = vbcast.lane.b32.xlu0 %v139, %s144
    %v146 = vpop.permute.xlu0 %145
    %v147 = vlaneseq
    %v148 = vshrl.u32 %v147, 7
    %v149 = vsub.s32 6, %v148
    %v150 = vrot.slane %v79, %v149
    %152 = vbcast.lane.b32.xlu0 %v150, 256
    %v153 = vpop.permute.xlu0 %152
    %s155 = sor.u32 256, 8
    %156 = vbcast.lane.b32.xlu0 %v150, %s155
    %v157 = vpop.permute.xlu0 %156
    %v158 = vlaneseq
    %v159 = vshrl.u32 %v158, 7
    %v160 = vsub.s32 7, %v159
    %v161 = vrot.slane %v79, %v160
    %163 = vbcast.lane.b32.xlu0 %v161, 256
    %v164 = vpop.permute.xlu0 %163
    %s166 = sor.u32 256, 8
    %167 = vbcast.lane.b32.xlu0 %v161, %s166
    %v168 = vpop.permute.xlu0 %167
    %v169 = vmul.f32 %v62, %v87
    %v170 = vmul.f32 %v63, %v91
    %v171 = vmul.f32 %v64, %v98
    %v172 = vmul.f32 %v65, %v102
    %v173 = vmul.f32 %v66, %v109
    %v174 = vmul.f32 %v67, %v113
    %v175 = vmul.f32 %v68, %v120
    %v176 = vmul.f32 %v69, %v124
    %v177 = vmul.f32 %v70, %v131
    %v178 = vmul.f32 %v71, %v135
    %v179 = vmul.f32 %v72, %v142
    %v180 = vmul.f32 %v73, %v146
    %v181 = vmul.f32 %v74, %v153
    %v182 = vmul.f32 %v75, %v157
    %v183 = vmul.f32 %v76, %v164
    %v184 = vmul.f32 %v77, %v168
    %vm185 = vcmask 261120
    %v186 = vsel %vm185, %v169, 0.0
    %v187 = vsel %vm185, %v170, 0.0
    %v188 = vadd.f32 %v186, %v187
    %v189 = vrot.slane %v188, 4
    %v190 = vadd.f32 %v188, %v189
    %v191 = vrot.slane %v190, 2
    %v192 = vadd.f32 %v190, %v191
    %v193 = vrot.slane %v192, 1
    %v194 = vadd.f32 %v192, %v193
    %v195 = vsel %vm185, %v171, 0.0
    %v196 = vsel %vm185, %v172, 0.0
    %v197 = vadd.f32 %v195, %v196
    %v198 = vrot.slane %v197, 4
    %v199 = vadd.f32 %v197, %v198
    %v200 = vrot.slane %v199, 2
    %v201 = vadd.f32 %v199, %v200
    %v202 = vrot.slane %v201, 1
    %v203 = vadd.f32 %v201, %v202
    %v204 = vsel %vm185, %v173, 0.0
    %v205 = vsel %vm185, %v174, 0.0
    %v206 = vadd.f32 %v204, %v205
    %v207 = vrot.slane %v206, 4
    %v208 = vadd.f32 %v206, %v207
    %v209 = vrot.slane %v208, 2
    %v210 = vadd.f32 %v208, %v209
    %v211 = vrot.slane %v210, 1
    %v212 = vadd.f32 %v210, %v211
    %v213 = vsel %vm185, %v175, 0.0
    %v214 = vsel %vm185, %v176, 0.0
    %v215 = vadd.f32 %v213, %v214
    %v216 = vrot.slane %v215, 4
    %v217 = vadd.f32 %v215, %v216
    %v218 = vrot.slane %v217, 2
    %v219 = vadd.f32 %v217, %v218
    %v220 = vrot.slane %v219, 1
    %v221 = vadd.f32 %v219, %v220
    %v222 = vsel %vm185, %v177, 0.0
    %v223 = vsel %vm185, %v178, 0.0
    %v224 = vadd.f32 %v222, %v223
    %v225 = vrot.slane %v224, 4
    %v226 = vadd.f32 %v224, %v225
    %v227 = vrot.slane %v226, 2
    %v228 = vadd.f32 %v226, %v227
    %v229 = vrot.slane %v228, 1
    %v230 = vadd.f32 %v228, %v229
    %v231 = vsel %vm185, %v179, 0.0
    %v232 = vsel %vm185, %v180, 0.0
    %v233 = vadd.f32 %v231, %v232
    %v234 = vrot.slane %v233, 4
    %v235 = vadd.f32 %v233, %v234
    %v236 = vrot.slane %v235, 2
    %v237 = vadd.f32 %v235, %v236
    %v238 = vrot.slane %v237, 1
    %v239 = vadd.f32 %v237, %v238
    %v240 = vsel %vm185, %v181, 0.0
    %v241 = vsel %vm185, %v182, 0.0
    %v242 = vadd.f32 %v240, %v241
    %v243 = vrot.slane %v242, 4
    %v244 = vadd.f32 %v242, %v243
    %v245 = vrot.slane %v244, 2
    %v246 = vadd.f32 %v244, %v245
    %v247 = vrot.slane %v246, 1
    %v248 = vadd.f32 %v246, %v247
    %v249 = vsel %vm185, %v183, 0.0
    %v250 = vsel %vm185, %v184, 0.0
    %v251 = vadd.f32 %v249, %v250
    %v252 = vrot.slane %v251, 4
    %v253 = vadd.f32 %v251, %v252
    %v254 = vrot.slane %v253, 2
    %v255 = vadd.f32 %v253, %v254
    %v256 = vrot.slane %v255, 1
    %v257 = vadd.f32 %v255, %v256
    %vm266 = vcmask 1041409
    %v267 = vsel %vm266, %v203, %v194
    %vm268 = vcmask 1042434
    %v269 = vsel %vm268, %v212, %v267
    %vm270 = vcmask 1043459
    %v271 = vsel %vm270, %v221, %v269
    %vm272 = vcmask 1044484
    %v273 = vsel %vm272, %v230, %v271
    %vm274 = vcmask 1045509
    %v275 = vsel %vm274, %v239, %v273
    %vm276 = vcmask 1046534
    %v277 = vsel %vm276, %v248, %v275
    %vm278 = vcmask 1047559
    %v279 = vsel %vm278, %v257, %v277
    %v281 = vadd.f32 %v80, %v279
    %282 = vst.msk [vmem:[#allocation2] sm:$0xff] %vm185, %v281
    %v283 = vld [vmem:[#allocation3] sm:$0xff]
    %vm284 = vcmask 130048
    %v285 = vsel %vm284, %v79, 0.0
    %286 = vadd.xlane.f32.xlu0 %v285
    %v287 = vpop.xlane.xlu0 %286
    %v288 = vadd.f32 %v283, %v287
    %vm289 = vcmask 7168
    %290 = vst.msk [vmem:[#allocation3] sm:$0xff] %vm289, %v288
    // Predicated region
    $region22: #{tpu_custom_call.1} parent=1 // pred_check
      %p291 = pneg %p38
    $region23: #{tpu_custom_call.1} parent=1 // pred_check_branch
      %293 = sbr.rel (%p291) target = $region25
    $region24: #{tpu_custom_call.1} parent=1 // pred_region
      %v294 = vld [vmem:[#allocation3] sm:$0xff]
      %v295 = vmax.f32 %v294, 1e-09
      %v296 = vld [vmem:[#allocation2] sm:$0xff]
      %v297 = vrcp.pop %v295
      %299 = vset.pattern.permute.xlu0 0
      %300 = vperm.xlu0 %299, %v297
      %v301 = vpop.permute.xlu0 %300
      %v303 = vmul.f32 %v296, %v301
      %304 = vst.msk [vmem:[#allocation9] sm:$0xff] %vm185, %v303
    $region25: #{tpu_custom_call.1} parent=1 // pred_fallthru
      _
    // Predicated region
    $region26: #{tpu_custom_call.1} parent=1 // pred_check
      _
    $region27: #{tpu_custom_call.1} parent=1 // pred_check_branch
      %306 = sbr.rel (0) target = $region29
    $region28: #{tpu_custom_call.1} parent=1 // pred_region
      %s308 = ssub.s32 128, 128
      %309 = vsyncadd [#allocation6], %s308
      %s311 = sshll.u32 [#allocation9], 4
      %s312 = int_to_ptr.vmem [resolvable:$true] %s311
      %314 = dma.vmem_to_hbm [thread:$0]  %s312, 128, %s2, [#allocation6]
    $region29: #{tpu_custom_call.1} parent=1 // pred_fallthru
      _
    // Predicated region
    $region30: #{tpu_custom_call.1} parent=1 // pred_check
      _
    $region31: #{tpu_custom_call.1} parent=1 // pred_check_branch
      %316 = sbr.rel (0) target = $region33
    $region32: #{tpu_custom_call.1} parent=1 // pred_region
      %317 = dma.done [#allocation6], 128
    $region33: #{tpu_custom_call.1} parent=1 // pred_fallthru
      _
    %318 = vsyncpa [#allocation5], 1
    %319 = vsyncpa [#allocation8], 1
    %320 = vsyncpa [#allocation6], 1

</llo_original>
